<compile_context>
chip_gen: v7x
topology: tpu7x:2x2x1
jax: 0.10.0
libtpu: 0.0.40
codegen_flags: <defaults>
</compile_context>

<pallas_src>
import math

import jax
import jax.numpy as jnp
from jax.experimental import pallas as pl
from jax.experimental.pallas import tpu as pltpu

_LANE = 128


def _attention_head_kernel(xq_ref, xk_ref, xv_ref,
                           wq_ref, bq_ref,
                           wk_ref, bk_ref,
                           wv_ref, bv_ref,
                           o_ref):
    bt, S, Din = xq_ref.shape
    Dp = wq_ref.shape[1]      # lane-padded projection width (multiple of 128)
    Dk = o_ref.shape[2]       # true output width (unpadded)

    # Fold the batch block into the matmul M dimension for the projections.
    xq = xq_ref[...].reshape(bt * S, Din)   # bf16
    xk = xk_ref[...].reshape(bt * S, Din)
    xv = xv_ref[...].reshape(bt * S, Din)

    # Projections: bf16 MXU operands, f32 accumulation, f32 bias add.
    # 1/sqrt(d_k) is pre-folded into wq/bq by the wrapper.
    q = (jnp.dot(xq, wq_ref[...], preferred_element_type=jnp.float32)
         + bq_ref[...]).reshape(bt, S, Dp)
    k = (jnp.dot(xk, wk_ref[...], preferred_element_type=jnp.float32)
         + bk_ref[...]).reshape(bt, S, Dp)
    v = (jnp.dot(xv, wv_ref[...], preferred_element_type=jnp.float32)
         + bv_ref[...]).reshape(bt, S, Dp)

    # q @ k^T: batched dot_general contracting the last dims (no explicit k transpose).
    # bf16 operands, f32 accumulation (padded columns are exactly zero -> no effect).
    logits = jax.lax.dot_general(
        q.astype(jnp.bfloat16), k.astype(jnp.bfloat16),
        dimension_numbers=(((2,), (2,)), ((0,), (0,))),
        preferred_element_type=jnp.float32)  # (bt, S, S)

    # Numerically-stable softmax over the last axis (f32).
    m = jnp.max(logits, axis=-1, keepdims=True)
    p = jnp.exp(logits - m)
    attn = p * pl.reciprocal(jnp.sum(p, axis=-1, keepdims=True), approx=True)

    # attn @ v, batched, bf16 operands with f32 accumulation.
    out = jax.lax.dot_general(
        attn.astype(jnp.bfloat16), v.astype(jnp.bfloat16),
        dimension_numbers=(((2,), (1,)), ((0,), (0,))),
        preferred_element_type=jnp.float32)  # (bt, S, Dp)

    # Store only the real Dk columns: avoids a padded HBM writeback + second slice pass.
    o_ref[...] = out[..., :Dk].astype(o_ref.dtype)


def _default_batch_block(B):
    """v7x has 2 TensorCores/chip: give the 'parallel' grid axis >= 2 iterations.
    v5e/v6e are single-TC: keep the whole batch in one grid step."""
    try:
        kind = jax.devices()[0].device_kind.lower()
    except Exception:  # pragma: no cover - device query should not fail on TPU
        kind = ""
    if ("v7" in kind or "7x" in kind) and B % 2 == 0 and B >= 2:
        return B // 2
    return B


def attention_head_forward(query, key, value, params, *, batch_block=None):
    """query/key/value: (B, S, dim_input) f32.  Returns (B, S, dim_k) f32."""
    B, S, Din = query.shape
    wq, bq = params["wq"], params["bq"]   # (Din, Dq), (1, Dq)
    wk, bk = params["wk"], params["bk"]   # (Din, Dk), (1, Dk)
    wv, bv = params["wv"], params["bv"]   # (Din, Dk), (1, Dk)
    Dq, Dk = wq.shape[1], wk.shape[1]
    assert Dq == Dk, "q @ k^T requires dim_q == dim_k (same as the PyTorch module)"

    # Lane-pad the projection width so the internal matmuls are 128-lane dense.
    Dp = ((max(Dq, Dk) + _LANE - 1) // _LANE) * _LANE
    scale = 1.0 / math.sqrt(Dq)  # d_k = q.shape[-1] = dim_q

    def pad_wb(w, b, s=1.0):
        d = w.shape[1]
        wp = jnp.pad(w * s, ((0, 0), (0, Dp - d))).astype(jnp.bfloat16)  # bf16 MXU path
        bp = jnp.pad(b * s, ((0, 0), (0, Dp - d)))                       # bias stays f32
        return wp, bp

    wqp, bqp = pad_wb(wq, bq, scale)   # fold 1/sqrt(d_k) into the query projection
    wkp, bkp = pad_wb(wk, bk)
    wvp, bvp = pad_wb(wv, bv)

    # bf16 input blocks (halves input DMA bytes, bf16 MXU operands).
    q_in = query.astype(jnp.bfloat16)
    k_in = key.astype(jnp.bfloat16)
    v_in = value.astype(jnp.bfloat16)

    # Grid/batch-block selection (generation-aware, see _default_batch_block).
    # NOTE: bt*S should ideally be >= 128 (v5e) / 256 (v6e/v7x) rows to fill the MXU;
    # at the demo shapes (B*S = 16) the whole batch is already the best we can do.
    bt = _default_batch_block(B) if batch_block is None else batch_block
    assert B % bt == 0
    num_blocks = B // bt
    grid = (num_blocks,)

    seq_spec = pl.BlockSpec((bt, S, Din), lambda b: (b, 0, 0))
    out_spec = pl.BlockSpec((bt, S, Dk), lambda b: (b, 0, 0))
    if num_blocks > 1:
        # Constant index_map -> the block is never re-DMA'd; single-buffer it so the
        # dead second VMEM buffer for 3 weights + 3 biases is not allocated.
        w_spec = pl.BlockSpec((Din, Dp), lambda b: (0, 0), pipeline_mode=pl.Buffered(1))
        b_spec = pl.BlockSpec((1, Dp), lambda b: (0, 0), pipeline_mode=pl.Buffered(1))
    else:
        w_spec = pl.BlockSpec((Din, Dp), lambda b: (0, 0))
        b_spec = pl.BlockSpec((1, Dp), lambda b: (0, 0))

    out = pl.pallas_call(
        _attention_head_kernel,
        out_shape=jax.ShapeDtypeStruct((B, S, Dk), jnp.float32),
        grid_spec=pltpu.PrefetchScalarGridSpec(
            num_scalar_prefetch=0,
            grid=grid,
            in_specs=[
                seq_spec, seq_spec, seq_spec,
                w_spec, b_spec,
                w_spec, b_spec,
                w_spec, b_spec,
            ],
            out_specs=out_spec,
        ),
        compiler_params=pltpu.CompilerParams(
            dimension_semantics=("parallel",)),
    )(q_in, k_in, v_in, wqp, bqp, wkp, bkp, wvp, bvp)

    return out


def init_params(key, dim_input, dim_q, dim_k):
    """Deterministic init mimicking nn.Linear's U(-1/sqrt(fan_in), 1/sqrt(fan_in))."""
    ks = jax.random.split(key, 6)
    bound = 1.0 / math.sqrt(dim_input)

    def u(k, shape):
        return jax.random.uniform(k, shape, jnp.float32, -bound, bound)

    # Stored as (dim_input, dim_out) == transpose of PyTorch's (dim_out, dim_in).
    return {
        "wq": u(ks[0], (dim_input, dim_q)), "bq": u(ks[1], (1, dim_q)),
        "wk": u(ks[2], (dim_input, dim_k)), "bk": u(ks[3], (1, dim_k)),
        "wv": u(ks[4], (dim_input, dim_k)), "bv": u(ks[5], (1, dim_k)),
    }


def _reference_forward(query, key, value, params):
    """Pure-JAX f32 reference of the PyTorch forward (mask=None)."""
    q = query @ params["wq"] + params["bq"][0]
    k = key @ params["wk"] + params["bk"][0]
    v = value @ params["wv"] + params["bv"][0]
    d_k = q.shape[-1]
    logits = jnp.einsum("bqd,bkd->bqk", q, k) / math.sqrt(d_k)
    attn = jax.nn.softmax(logits, axis=-1)
    return jnp.einsum("bqk,bkd->bqd", attn, v)


if __name__ == "__main__":
    B, S = 2, 8
    dim_input, dim_q, dim_k = 32, 16, 16  # dim_q == dim_k required by q @ k^T

    root = jax.random.PRNGKey(0)
    k_params, k_q, k_k, k_v = jax.random.split(root, 4)

    params = init_params(k_params, dim_input, dim_q, dim_k)
    query = jax.random.normal(k_q, (B, S, dim_input), jnp.float32)
    key_in = jax.random.normal(k_k, (B, S, dim_input), jnp.float32)
    value = jax.random.normal(k_v, (B, S, dim_input), jnp.float32)

    out = attention_head_forward(query, key_in, value, params)
    out = jax.block_until_ready(out)

    ref = _reference_forward(query, key_in, value, params)
    assert out.shape == (B, S, dim_k), out.shape
    # Tolerance accounts for bf16 MXU operands (inputs/weights + attention matmuls,
    # f32 accumulation) and the approximate EUP reciprocal in the softmax.
    assert jnp.allclose(out, ref, atol=3e-2, rtol=3e-2), "mismatch vs reference"

    print("KERNEL_OK")
</pallas_src>

<mosaic_0001>
module attributes {stable_mosaic.version = 11 : i64} {
  func.func @_attention_head_kernel(%arg0: i32, %arg1: memref<2x8x32xbf16, #tpu.memory_space<vmem>>, %arg2: memref<2x8x32xbf16, #tpu.memory_space<vmem>>, %arg3: memref<2x8x32xbf16, #tpu.memory_space<vmem>>, %arg4: memref<32x128xbf16, #tpu.memory_space<vmem>>, %arg5: memref<1x128xf32, #tpu.memory_space<vmem>>, %arg6: memref<32x128xbf16, #tpu.memory_space<vmem>>, %arg7: memref<1x128xf32, #tpu.memory_space<vmem>>, %arg8: memref<32x128xbf16, #tpu.memory_space<vmem>>, %arg9: memref<1x128xf32, #tpu.memory_space<vmem>>, %arg10: memref<2x8x16xf32, #tpu.memory_space<vmem>>) attributes {dimension_semantics = [#tpu.dimension_semantics<parallel>], iteration_bounds = array<i64: 1>, scalar_prefetch = 0 : i64, scratch_operands = 0 : i64, tpu.core_type = #tpu.core_type<tc>, window_params = [{transform_indices = @transform_0, window_bounds = array<i64: 2, 8, 32>}, {transform_indices = @transform_1, window_bounds = array<i64: 2, 8, 32>}, {transform_indices = @transform_2, window_bounds = array<i64: 2, 8, 32>}, {pipeline_mode = #tpu.pipeline_mode<synchronous>, transform_indices = @transform_3, window_bounds = array<i64: 32, 128>}, {pipeline_mode = #tpu.pipeline_mode<synchronous>, transform_indices = @transform_4, window_bounds = array<i64: 1, 128>}, {pipeline_mode = #tpu.pipeline_mode<synchronous>, transform_indices = @transform_5, window_bounds = array<i64: 32, 128>}, {pipeline_mode = #tpu.pipeline_mode<synchronous>, transform_indices = @transform_6, window_bounds = array<i64: 1, 128>}, {pipeline_mode = #tpu.pipeline_mode<synchronous>, transform_indices = @transform_7, window_bounds = array<i64: 32, 128>}, {pipeline_mode = #tpu.pipeline_mode<synchronous>, transform_indices = @transform_8, window_bounds = array<i64: 1, 128>}, {transform_indices = @transform_9, window_bounds = array<i64: 2, 8, 16>}]} {
    %c0 = arith.constant 0 : index
    %c0_0 = arith.constant 0 : index
    %c0_1 = arith.constant 0 : index
    %0 = vector.load %arg1[%c0, %c0_0, %c0_1] : memref<2x8x32xbf16, #tpu.memory_space<vmem>>, vector<2x8x32xbf16>
    %1 = vector.shape_cast %0 : vector<2x8x32xbf16> to vector<16x32xbf16>
    %c0_2 = arith.constant 0 : index
    %c0_3 = arith.constant 0 : index
    %c0_4 = arith.constant 0 : index
    %2 = vector.load %arg2[%c0_2, %c0_3, %c0_4] : memref<2x8x32xbf16, #tpu.memory_space<vmem>>, vector<2x8x32xbf16>
    %3 = vector.shape_cast %2 : vector<2x8x32xbf16> to vector<16x32xbf16>
    %c0_5 = arith.constant 0 : index
    %c0_6 = arith.constant 0 : index
    %c0_7 = arith.constant 0 : index
    %4 = vector.load %arg3[%c0_5, %c0_6, %c0_7] : memref<2x8x32xbf16, #tpu.memory_space<vmem>>, vector<2x8x32xbf16>
    %5 = vector.shape_cast %4 : vector<2x8x32xbf16> to vector<16x32xbf16>
    %c0_8 = arith.constant 0 : index
    %c0_9 = arith.constant 0 : index
    %6 = vector.load %arg4[%c0_8, %c0_9] : memref<32x128xbf16, #tpu.memory_space<vmem>>, vector<32x128xbf16>
    %cst = arith.constant dense<0.000000e+00> : vector<16x128xf32>
    %7 = tpu.matmul %1, %6, %cst {dimension_numbers = #tpu.dot_dimension_numbers<[1], [0], [0], [1], [0, 0, 1, 1], [], []>} : vector<16x32xbf16>, vector<32x128xbf16>, vector<16x128xf32> -> vector<16x128xf32>
    %c0_10 = arith.constant 0 : index
    %c0_11 = arith.constant 0 : index
    %8 = vector.load %arg5[%c0_10, %c0_11] : memref<1x128xf32, #tpu.memory_space<vmem>>, vector<1x128xf32>
    %9 = vector.broadcast %8 : vector<1x128xf32> to vector<16x128xf32>
    %10 = arith.addf %7, %9 : vector<16x128xf32>
    %11 = vector.shape_cast %10 : vector<16x128xf32> to vector<2x8x128xf32>
    %c0_12 = arith.constant 0 : index
    %c0_13 = arith.constant 0 : index
    %12 = vector.load %arg6[%c0_12, %c0_13] : memref<32x128xbf16, #tpu.memory_space<vmem>>, vector<32x128xbf16>
    %cst_14 = arith.constant dense<0.000000e+00> : vector<16x128xf32>
    %13 = tpu.matmul %3, %12, %cst_14 {dimension_numbers = #tpu.dot_dimension_numbers<[1], [0], [0], [1], [0, 0, 1, 1], [], []>} : vector<16x32xbf16>, vector<32x128xbf16>, vector<16x128xf32> -> vector<16x128xf32>
    %c0_15 = arith.constant 0 : index
    %c0_16 = arith.constant 0 : index
    %14 = vector.load %arg7[%c0_15, %c0_16] : memref<1x128xf32, #tpu.memory_space<vmem>>, vector<1x128xf32>
    %15 = vector.broadcast %14 : vector<1x128xf32> to vector<16x128xf32>
    %16 = arith.addf %13, %15 : vector<16x128xf32>
    %17 = vector.shape_cast %16 : vector<16x128xf32> to vector<2x8x128xf32>
    %c0_17 = arith.constant 0 : index
    %c0_18 = arith.constant 0 : index
    %18 = vector.load %arg8[%c0_17, %c0_18] : memref<32x128xbf16, #tpu.memory_space<vmem>>, vector<32x128xbf16>
    %cst_19 = arith.constant dense<0.000000e+00> : vector<16x128xf32>
    %19 = tpu.matmul %5, %18, %cst_19 {dimension_numbers = #tpu.dot_dimension_numbers<[1], [0], [0], [1], [0, 0, 1, 1], [], []>} : vector<16x32xbf16>, vector<32x128xbf16>, vector<16x128xf32> -> vector<16x128xf32>
    %c0_20 = arith.constant 0 : index
    %c0_21 = arith.constant 0 : index
    %20 = vector.load %arg9[%c0_20, %c0_21] : memref<1x128xf32, #tpu.memory_space<vmem>>, vector<1x128xf32>
    %21 = vector.broadcast %20 : vector<1x128xf32> to vector<16x128xf32>
    %22 = arith.addf %19, %21 : vector<16x128xf32>
    %23 = vector.shape_cast %22 : vector<16x128xf32> to vector<2x8x128xf32>
    %24 = arith.truncf %11 : vector<2x8x128xf32> to vector<2x8x128xbf16>
    %25 = arith.truncf %17 : vector<2x8x128xf32> to vector<2x8x128xbf16>
    %cst_22 = arith.constant dense<0.000000e+00> : vector<2x8x8xf32>
    %26 = tpu.matmul %24, %25, %cst_22 {dimension_numbers = #tpu.dot_dimension_numbers<[2], [2], [1], [1], [0, 0, 0, 1, 1, 1], [0], [0]>} : vector<2x8x128xbf16>, vector<2x8x128xbf16>, vector<2x8x8xf32> -> vector<2x8x8xf32>
    %cst_23 = arith.constant dense<0xFF800000> : vector<2x8xf32>
    %27 = vector.multi_reduction <maximumf>, %26, %cst_23 [2] : vector<2x8x8xf32> to vector<2x8xf32>
    %28 = vector.shape_cast %27 : vector<2x8xf32> to vector<2x8x1xf32>
    %29 = vector.broadcast %28 : vector<2x8x1xf32> to vector<2x8x8xf32>
    %30 = arith.subf %26, %29 : vector<2x8x8xf32>
    %31 = math.exp %30 : vector<2x8x8xf32>
    %cst_24 = arith.constant dense<0.000000e+00> : vector<2x8xf32>
    %32 = vector.multi_reduction <add>, %31, %cst_24 [2] : vector<2x8x8xf32> to vector<2x8xf32>
    %33 = vector.shape_cast %32 : vector<2x8xf32> to vector<2x8x1xf32>
    %34 = tpu.reciprocal %33 {approx = true} : vector<2x8x1xf32> -> vector<2x8x1xf32>
    %35 = vector.broadcast %34 : vector<2x8x1xf32> to vector<2x8x8xf32>
    %36 = arith.mulf %31, %35 : vector<2x8x8xf32>
    %37 = arith.truncf %36 : vector<2x8x8xf32> to vector<2x8x8xbf16>
    %38 = arith.truncf %23 : vector<2x8x128xf32> to vector<2x8x128xbf16>
    %cst_25 = arith.constant dense<0.000000e+00> : vector<2x8x128xf32>
    %39 = tpu.matmul %37, %38, %cst_25 {dimension_numbers = #tpu.dot_dimension_numbers<[2], [1], [1], [2], [0, 0, 0, 1, 1, 2], [0], [0]>} : vector<2x8x8xbf16>, vector<2x8x128xbf16>, vector<2x8x128xf32> -> vector<2x8x128xf32>
    %40 = vector.extract_strided_slice %39 {offsets = [0, 0, 0], sizes = [2, 8, 16], strides = [1, 1, 1]} : vector<2x8x128xf32> to vector<2x8x16xf32>
    %c0_26 = arith.constant 0 : index
    %c0_27 = arith.constant 0 : index
    %c0_28 = arith.constant 0 : index
    %41 = vector.load %arg10[%c0_26, %c0_27, %c0_28] : memref<2x8x16xf32, #tpu.memory_space<vmem>>, vector<2x8x16xf32>
    tpu.vector_store %arg10[%c0_26, %c0_27, %c0_28], %40 {strides = array<i32>} : memref<2x8x16xf32, #tpu.memory_space<vmem>>, vector<2x8x16xf32>,
    return
  }
  func.func @transform_0(%arg0: i32) -> (i32, i32, i32) {
    %c0_i32 = arith.constant 0 : i32
    %c0_i32_0 = arith.constant 0 : i32
    %c0_i32_1 = arith.constant 0 : i32
    return %arg0, %c0_i32, %c0_i32_0 : i32, i32, i32
  }
  func.func @transform_1(%arg0: i32) -> (i32, i32, i32) {
    %c0_i32 = arith.constant 0 : i32
    %c0_i32_0 = arith.constant 0 : i32
    %c0_i32_1 = arith.constant 0 : i32
    return %arg0, %c0_i32, %c0_i32_0 : i32, i32, i32
  }
  func.func @transform_2(%arg0: i32) -> (i32, i32, i32) {
    %c0_i32 = arith.constant 0 : i32
    %c0_i32_0 = arith.constant 0 : i32
    %c0_i32_1 = arith.constant 0 : i32
    return %arg0, %c0_i32, %c0_i32_0 : i32, i32, i32
  }
  func.func @transform_3(%arg0: i32) -> (i32, i32) {
    %c0_i32 = arith.constant 0 : i32
    %c0_i32_0 = arith.constant 0 : i32
    %c0_i32_1 = arith.constant 0 : i32
    return %c0_i32, %c0_i32_0 : i32, i32
  }
  func.func @transform_4(%arg0: i32) -> (i32, i32) {
    %c0_i32 = arith.constant 0 : i32
    %c0_i32_0 = arith.constant 0 : i32
    %c0_i32_1 = arith.constant 0 : i32
    return %c0_i32, %c0_i32_0 : i32, i32
  }
  func.func @transform_5(%arg0: i32) -> (i32, i32) {
    %c0_i32 = arith.constant 0 : i32
    %c0_i32_0 = arith.constant 0 : i32
    %c0_i32_1 = arith.constant 0 : i32
    return %c0_i32, %c0_i32_0 : i32, i32
  }
  func.func @transform_6(%arg0: i32) -> (i32, i32) {
    %c0_i32 = arith.constant 0 : i32
    %c0_i32_0 = arith.constant 0 : i32
    %c0_i32_1 = arith.constant 0 : i32
    return %c0_i32, %c0_i32_0 : i32, i32
  }
  func.func @transform_7(%arg0: i32) -> (i32, i32) {
    %c0_i32 = arith.constant 0 : i32
    %c0_i32_0 = arith.constant 0 : i32
    %c0_i32_1 = arith.constant 0 : i32
    return %c0_i32, %c0_i32_0 : i32, i32
  }
  func.func @transform_8(%arg0: i32) -> (i32, i32) {
    %c0_i32 = arith.constant 0 : i32
    %c0_i32_0 = arith.constant 0 : i32
    %c0_i32_1 = arith.constant 0 : i32
    return %c0_i32, %c0_i32_0 : i32, i32
  }
  func.func @transform_9(%arg0: i32) -> (i32, i32, i32) {
    %c0_i32 = arith.constant 0 : i32
    %c0_i32_0 = arith.constant 0 : i32
    %c0_i32_1 = arith.constant 0 : i32
    return %arg0, %c0_i32, %c0_i32_0 : i32, i32, i32
  }
}

</mosaic_0001>

<llo_original>
// kernel: tpu_custom_call.1
$region0: #{tpu_custom_call.1}
  #allocation0 [shape = 'u32[]', space=smem, size = 0x4, offset = 0x4, fixed_abs, tag = 'smem constant byte address 0x4 - core index']
  #allocation1 [shape = 'u32[144,128]{1,0:T(1,128)}', space=vmem, size = 0x12000, scoped, tag = 'internal scratch']
  %s0 = inlined_call_operand.hbm [shape: bf16[2,8,32], index: 0, kind: input, shape index: {}]
  %s1 = inlined_call_operand.hbm [shape: bf16[2,8,32], index: 1, kind: input, shape index: {}]
  %s2 = inlined_call_operand.hbm [shape: bf16[2,8,32], index: 2, kind: input, shape index: {}]
  %s3 = inlined_call_operand.hbm [shape: bf16[32,128], index: 3, kind: input, shape index: {}]
  %s4 = inlined_call_operand.vmem [shape: f32[1,128], index: 4, kind: input, shape index: {}]
  %s5 = inlined_call_operand.vmem [shape: bf16[32,128], index: 5, kind: input, shape index: {}]
  %s6 = inlined_call_operand.vmem [shape: f32[1,128], index: 6, kind: input, shape index: {}]
  %s7 = inlined_call_operand.hbm [shape: bf16[32,128], index: 7, kind: input, shape index: {}]
  %s8 = inlined_call_operand.vmem [shape: f32[1,128], index: 8, kind: input, shape index: {}]
  %s9 = inlined_call_operand.hbm [shape: f32[2,8,16], index: 9, kind: output, shape index: {}]
  %s10 = sld [smem:[#allocation0]]
  $region66: #{tpu_custom_call.1} parent=0
    _
  %s12 = ssub.s32 1, %s10
  %s13 = scalar_select 0, %s12, %s10
  $region1: #{tpu_custom_call.1} parent=0
    #allocation2 [shape = 'u8[4096]{0}', space=vmem, size = 0x1000, scoped, tag = 'input window, operand 0, single buffered']
    #allocation3 [shape = 's32[1]{0}', space=sflag, size = 0x4, scoped, tag = 'scoped memory for tpu_custom_call.1']
    #allocation4 [shape = 's32[1]{0}', space=sflag, size = 0x4, scoped, tag = 'scoped memory for tpu_custom_call.1']
    #allocation5 [shape = 'u8[4096]{0}', space=vmem, size = 0x1000, scoped, tag = 'input window, operand 1, single buffered']
    #allocation6 [shape = 's32[1]{0}', space=sflag, size = 0x4, scoped, tag = 'scoped memory for tpu_custom_call.1']
    #allocation7 [shape = 'u8[4096]{0}', space=vmem, size = 0x1000, scoped, tag = 'input window, operand 2, single buffered']
    #allocation8 [shape = 'u8[8192]{0}', space=vmem, size = 0x2000, scoped, tag = 'input window, operand 3, single buffered']
    #allocation9 [shape = 's32[1]{0}', space=sflag, size = 0x4, scoped, tag = 'scoped memory for tpu_custom_call.1']
    #allocation10 [shape = 'u8[8192]{0}', space=vmem, size = 0x2000, scoped, tag = 'input window, operand 7, single buffered']
    #allocation11 [shape = 'u8[8192]{0}', space=vmem, size = 0x2000, scoped, tag = 'output window, operand 0, single buffered']
    %14 = vsyncpa [#allocation3], 0
    %15 = vsyncpa [#allocation6], 0
    %16 = vsyncpa [#allocation9], 0
    %17 = vsyncpa [#allocation4], 0
    // Predicated region
    $region2: #{tpu_custom_call.1} parent=1 // pred_check
      _
    $region3: #{tpu_custom_call.1} parent=1 // pred_check_branch
      %19 = sbr.rel (0) target = $region5
    $region4: #{tpu_custom_call.1} parent=1 // pred_region
      %s21 = ssub.s32 128, 128
      %22 = vsyncadd [#allocation3], %s21
      %s23 = sshll.u32 [#allocation2], 4
      %s24 = int_to_ptr.vmem [resolvable:$true] %s23
      %29 = dma.hbm_to_vmem [thread:$0]  %s0, 128, %s24, [#allocation3], 64, 64, 4
    $region5: #{tpu_custom_call.1} parent=1 // pred_fallthru
      _
    // Predicated region
    $region6: #{tpu_custom_call.1} parent=1 // pred_check
      _
    $region7: #{tpu_custom_call.1} parent=1 // pred_check_branch
      %31 = sbr.rel (0) target = $region9
    $region8: #{tpu_custom_call.1} parent=1 // pred_region
      %s33 = ssub.s32 128, 128
      %34 = vsyncadd [#allocation6], %s33
      %s35 = sshll.u32 [#allocation5], 4
      %s36 = int_to_ptr.vmem [resolvable:$true] %s35
      %41 = dma.hbm_to_vmem [thread:$0]  %s1, 128, %s36, [#allocation6], 64, 64, 4
    $region9: #{tpu_custom_call.1} parent=1 // pred_fallthru
      _
    // Predicated region
    $region10: #{tpu_custom_call.1} parent=1 // pred_check
      _
    $region11: #{tpu_custom_call.1} parent=1 // pred_check_branch
      %43 = sbr.rel (0) target = $region13
    $region12: #{tpu_custom_call.1} parent=1 // pred_region
      %s45 = ssub.s32 128, 128
      %46 = vsyncadd [#allocation6], %s45
      %s47 = sshll.u32 [#allocation7], 4
      %s48 = int_to_ptr.vmem [resolvable:$true] %s47
      %53 = dma.hbm_to_vmem [thread:$0]  %s2, 128, %s48, [#allocation6], 64, 64, 4
    $region13: #{tpu_custom_call.1} parent=1 // pred_fallthru
      _
    // Predicated region
    $region14: #{tpu_custom_call.1} parent=1 // pred_check
      _
    $region15: #{tpu_custom_call.1} parent=1 // pred_check_branch
      %55 = sbr.rel (0) target = $region17
    $region16: #{tpu_custom_call.1} parent=1 // pred_region
      %s57 = ssub.s32 256, 256
      %58 = vsyncadd [#allocation9], %s57
      %s59 = sshll.u32 [#allocation8], 4
      %s60 = int_to_ptr.vmem [resolvable:$true] %s59
      %65 = dma.hbm_to_vmem [thread:$0]  %s3, 256, %s60, [#allocation9], 64, 64, 4
    $region17: #{tpu_custom_call.1} parent=1 // pred_fallthru
      _
    // Predicated region
    $region18: #{tpu_custom_call.1} parent=1 // pred_check
      _
    $region19: #{tpu_custom_call.1} parent=1 // pred_check_branch
      %67 = sbr.rel (0) target = $region21
    $region20: #{tpu_custom_call.1} parent=1 // pred_region
      _
    $region21: #{tpu_custom_call.1} parent=1 // pred_fallthru
      _
    // Predicated region
    $region22: #{tpu_custom_call.1} parent=1 // pred_check
      _
    $region23: #{tpu_custom_call.1} parent=1 // pred_check_branch
      %69 = sbr.rel (0) target = $region25
    $region24: #{tpu_custom_call.1} parent=1 // pred_region
      _
    $region25: #{tpu_custom_call.1} parent=1 // pred_fallthru
      _
    // Predicated region
    $region26: #{tpu_custom_call.1} parent=1 // pred_check
      _
    $region27: #{tpu_custom_call.1} parent=1 // pred_check_branch
      %71 = sbr.rel (0) target = $region29
    $region28: #{tpu_custom_call.1} parent=1 // pred_region
      _
    $region29: #{tpu_custom_call.1} parent=1 // pred_fallthru
      _
    // Predicated region
    $region30: #{tpu_custom_call.1} parent=1 // pred_check
      _
    $region31: #{tpu_custom_call.1} parent=1 // pred_check_branch
      %73 = sbr.rel (0) target = $region33
    $region32: #{tpu_custom_call.1} parent=1 // pred_region
      %s75 = ssub.s32 256, 256
      %76 = vsyncadd [#allocation9], %s75
      %s77 = sshll.u32 [#allocation10], 4
      %s78 = int_to_ptr.vmem [resolvable:$true] %s77
      %83 = dma.hbm_to_vmem [thread:$0]  %s7, 256, %s78, [#allocation9], 64, 64, 4
    $region33: #{tpu_custom_call.1} parent=1 // pred_fallthru
      _
    // Predicated region
    $region34: #{tpu_custom_call.1} parent=1 // pred_check
      _
    $region35: #{tpu_custom_call.1} parent=1 // pred_check_branch
      %85 = sbr.rel (0) target = $region37
    $region36: #{tpu_custom_call.1} parent=1 // pred_region
      _
    $region37: #{tpu_custom_call.1} parent=1 // pred_fallthru
      _
    // Predicated region
    $region38: #{tpu_custom_call.1} parent=1 // pred_check
      _
    $region39: #{tpu_custom_call.1} parent=1 // pred_check_branch
      %87 = sbr.rel (0) target = $region41
    $region40: #{tpu_custom_call.1} parent=1 // pred_region
      %88 = dma.done [#allocation3], 128
    $region41: #{tpu_custom_call.1} parent=1 // pred_fallthru
      _
    // Predicated region
    $region42: #{tpu_custom_call.1} parent=1 // pred_check
      _
    $region43: #{tpu_custom_call.1} parent=1 // pred_check_branch
      %90 = sbr.rel (0) target = $region45
    $region44: #{tpu_custom_call.1} parent=1 // pred_region
      %91 = dma.done [#allocation6], 128
    $region45: #{tpu_custom_call.1} parent=1 // pred_fallthru
      _
    // Predicated region
    $region46: #{tpu_custom_call.1} parent=1 // pred_check
      _
    $region47: #{tpu_custom_call.1} parent=1 // pred_check_branch
      %93 = sbr.rel (0) target = $region49
    $region48: #{tpu_custom_call.1} parent=1 // pred_region
      %94 = dma.done [#allocation6], 128
    $region49: #{tpu_custom_call.1} parent=1 // pred_fallthru
      _
    // Predicated region
    $region50: #{tpu_custom_call.1} parent=1 // pred_check
      _
    $region51: #{tpu_custom_call.1} parent=1 // pred_check_branch
      %96 = sbr.rel (0) target = $region53
    $region52: #{tpu_custom_call.1} parent=1 // pred_region
      %97 = dma.done [#allocation9], 256
    $region53: #{tpu_custom_call.1} parent=1 // pred_fallthru
      _
    // Predicated region
    $region54: #{tpu_custom_call.1} parent=1 // pred_check
      _
    $region55: #{tpu_custom_call.1} parent=1 // pred_check_branch
      %99 = sbr.rel (0) target = $region57
    $region56: #{tpu_custom_call.1} parent=1 // pred_region
      %100 = dma.done [#allocation9], 256
    $region57: #{tpu_custom_call.1} parent=1 // pred_fallthru
      _
    %v102 = vld [vmem:[#allocation2] sm:$0xf]
    %v103 = vld [vmem:[#allocation2 + $0x4] sm:$0xf]
    %v104 = vld [vmem:[#allocation5] sm:$0xf]
    %v105 = vld [vmem:[#allocation5 + $0x4] sm:$0xf]
    %v106 = vld [vmem:[#allocation7] sm:$0xf]
    %v107 = vld [vmem:[#allocation7 + $0x4] sm:$0xf]
    %v108 = vld [vmem:[#allocation8] sm:$0xf]
    %v109 = vld [vmem:[#allocation8 + $0x4] sm:$0xf]
    %v110 = vld [vmem:[#allocation8 + $0x8] sm:$0xf]
    %v111 = vld [vmem:[#allocation8 + $0xc] sm:$0xf]
    %v112 = vld [vmem:[%s4] sm:$0x1]
    %v114 = vlaneseq
    %v115 = vshrl.u32 %v114, 7
    %v116 = vsub.s32 0, %v115
    %v117 = vrot.slane %v112, %v116
    %v121 = vunpack.c.l.b16 %v102
    %v122 = vunpack.c.l.b16 %v103
    %v123 = vpack.c.b16 %v122, %v121
    %v128 = vunpack.c.l.b16 %v108
    %v129 = vunpack.c.l.b16 %v109
    %v130 = vunpack.c.l.b16 %v110
    %v131 = vunpack.c.l.b16 %v111
    %v132 = vpack.c.b16 %v129, %v128
    %v133 = vpack.c.b16 %v131, %v130
    %vm136 = vcmask 261120
    %v138 = vsel %vm136, %v123, 0
    %140 = vmatprep.subr.bf16.mxu0 0
    %141 = vmatpush1.bf16.msra.mxu0 %v132
    %142 = vmatprep.subr.bf16.mxu0 0
    %143 = vmatpush1.bf16.msra.mxu0 %v133
    %144 = vmatprep.subr.bf16.mxu0 0
    %145 = vmatpush1.bf16.msra.mxu0 0
    %146 = vmatprep.subr.bf16.mxu0 0
    %147 = vmatpush1.bf16.msra.mxu0 0
    %148 = vmatprep.subr.bf16.mxu0 0
    %149 = vmatpush1.bf16.msra.mxu0 0
    %150 = vmatprep.subr.bf16.mxu0 0
    %151 = vmatpush1.bf16.msra.mxu0 0
    %152 = vmatprep.subr.bf16.mxu0 0
    %153 = vmatpush1.bf16.msra.mxu0 0
    %154 = vmatprep.subr.bf16.mxu0 0
    %155 = vmatpush1.bf16.msra.mxu0 0
    %156 = vmatprep.subr.bf16.mxu0 0
    %157 = vmatpush1.bf16.msra.mxu0 0
    %158 = vmatprep.subr.bf16.mxu0 0
    %159 = vmatpush1.bf16.msra.mxu0 0
    %160 = vmatprep.subr.bf16.mxu0 0
    %161 = vmatpush1.bf16.msra.mxu0 0
    %162 = vmatprep.subr.bf16.mxu0 0
    %163 = vmatpush1.bf16.msra.mxu0 0
    %164 = vmatprep.subr.bf16.mxu0 0
    %165 = vmatpush1.bf16.msra.mxu0 0
    %166 = vmatprep.subr.bf16.mxu0 0
    %167 = vmatpush1.bf16.msra.mxu0 0
    %168 = vmatprep.subr.bf16.mxu0 0
    %169 = vmatpush1.bf16.msra.mxu0 0
    %170 = vmatprep.subr.bf16.mxu0 0
    %171 = vmatpush1.bf16.msra.mxu0 0
    %172 = vmatprep.mubr.bf16.mxu0 0
    %173 = vmatmul.mubr.bf16.gmra.mrb[0].mxu0 %v138
    %v174 = vpop.f32.mrb[0].mxu0
    %v175 = vadd.f32 %v117, %v174
    %v176 = vpop.f32.mrb[0].mxu0
    %v177 = vpop.f32.mrb[0].mxu0
    %v178 = vadd.f32 %v117, %v177
    %v179 = vpop.f32.mrb[0].mxu0
    %180 = vdwg.mxu0
    %v181 = vld [vmem:[%s5] sm:$0xf]
    %v182 = vld [vmem:[%s5 + $0x4] sm:$0xf]
    %v183 = vld [vmem:[%s5 + $0x8] sm:$0xf]
    %v184 = vld [vmem:[%s5 + $0xc] sm:$0xf]
    %v185 = vld [vmem:[%s6] sm:$0x1]
    %v187 = vlaneseq
    %v188 = vshrl.u32 %v187, 7
    %v189 = vsub.s32 0, %v188
    %v190 = vrot.slane %v185, %v189
    %v194 = vunpack.c.l.b16 %v104
    %v195 = vunpack.c.l.b16 %v105
    %v196 = vpack.c.b16 %v195, %v194
    %v201 = vunpack.c.l.b16 %v181
    %v202 = vunpack.c.l.b16 %v182
    %v203 = vunpack.c.l.b16 %v183
    %v204 = vunpack.c.l.b16 %v184
    %v205 = vpack.c.b16 %v202, %v201
    %v206 = vpack.c.b16 %v204, %v203
    %v210 = vsel %vm136, %v196, 0
    %212 = vmatprep.subr.bf16.mxu0 0
    %213 = vmatpush1.bf16.msra.mxu0 %v205
    %214 = vmatprep.subr.bf16.mxu0 0
    %215 = vmatpush1.bf16.msra.mxu0 %v206
    %216 = vmatprep.subr.bf16.mxu0 0
    %217 = vmatpush1.bf16.msra.mxu0 0
    %218 = vmatprep.subr.bf16.mxu0 0
    %219 = vmatpush1.bf16.msra.mxu0 0
    %220 = vmatprep.subr.bf16.mxu0 0
    %221 = vmatpush1.bf16.msra.mxu0 0
    %222 = vmatprep.subr.bf16.mxu0 0
    %223 = vmatpush1.bf16.msra.mxu0 0
    %224 = vmatprep.subr.bf16.mxu0 0
    %225 = vmatpush1.bf16.msra.mxu0 0
    %226 = vmatprep.subr.bf16.mxu0 0
    %227 = vmatpush1.bf16.msra.mxu0 0
    %228 = vmatprep.subr.bf16.mxu0 0
    %229 = vmatpush1.bf16.msra.mxu0 0
    %230 = vmatprep.subr.bf16.mxu0 0
    %231 = vmatpush1.bf16.msra.mxu0 0
    %232 = vmatprep.subr.bf16.mxu0 0
    %233 = vmatpush1.bf16.msra.mxu0 0
    %234 = vmatprep.subr.bf16.mxu0 0
    %235 = vmatpush1.bf16.msra.mxu0 0
    %236 = vmatprep.subr.bf16.mxu0 0
    %237 = vmatpush1.bf16.msra.mxu0 0
    %238 = vmatprep.subr.bf16.mxu0 0
    %239 = vmatpush1.bf16.msra.mxu0 0
    %240 = vmatprep.subr.bf16.mxu0 0
    %241 = vmatpush1.bf16.msra.mxu0 0
    %242 = vmatprep.subr.bf16.mxu0 0
    %243 = vmatpush1.bf16.msra.mxu0 0
    %244 = vmatprep.mubr.bf16.mxu0 0
    %245 = vmatmul.mubr.bf16.gmra.mrb[0].mxu0 %v210
    %v246 = vpop.f32.mrb[0].mxu0
    %v247 = vadd.f32 %v190, %v246
    %v248 = vpop.f32.mrb[0].mxu0
    %v249 = vpop.f32.mrb[0].mxu0
    %v250 = vadd.f32 %v190, %v249
    %v251 = vpop.f32.mrb[0].mxu0
    %252 = vdwg.mxu0
    %v253 = vld [vmem:[#allocation10] sm:$0xf]
    %v254 = vld [vmem:[#allocation10 + $0x4] sm:$0xf]
    %v255 = vld [vmem:[#allocation10 + $0x8] sm:$0xf]
    %v256 = vld [vmem:[#allocation10 + $0xc] sm:$0xf]
    %v257 = vld [vmem:[%s8] sm:$0x1]
    %v259 = vlaneseq
    %v260 = vshrl.u32 %v259, 7
    %v261 = vsub.s32 0, %v260
    %v262 = vrot.slane %v257, %v261
    %v266 = vunpack.c.l.b16 %v106
    %v267 = vunpack.c.l.b16 %v107
    %v268 = vpack.c.b16 %v267, %v266
    %v273 = vunpack.c.l.b16 %v253
    %v274 = vunpack.c.l.b16 %v254
    %v275 = vunpack.c.l.b16 %v255
    %v276 = vunpack.c.l.b16 %v256
    %v277 = vpack.c.b16 %v274, %v273
    %v278 = vpack.c.b16 %v276, %v275
    %v282 = vsel %vm136, %v268, 0
    %284 = vmatprep.subr.bf16.mxu0 0
    %285 = vmatpush1.bf16.msra.mxu0 %v277
    %286 = vmatprep.subr.bf16.mxu0 0
    %287 = vmatpush1.bf16.msra.mxu0 %v278
    %288 = vmatprep.subr.bf16.mxu0 0
    %289 = vmatpush1.bf16.msra.mxu0 0
    %290 = vmatprep.subr.bf16.mxu0 0
    %291 = vmatpush1.bf16.msra.mxu0 0
    %292 = vmatprep.subr.bf16.mxu0 0
    %293 = vmatpush1.bf16.msra.mxu0 0
    %294 = vmatprep.subr.bf16.mxu0 0
    %295 = vmatpush1.bf16.msra.mxu0 0
    %296 = vmatprep.subr.bf16.mxu0 0
    %297 = vmatpush1.bf16.msra.mxu0 0
    %298 = vmatprep.subr.bf16.mxu0 0
    %299 = vmatpush1.bf16.msra.mxu0 0
    %300 = vmatprep.subr.bf16.mxu0 0
    %301 = vmatpush1.bf16.msra.mxu0 0
    %302 = vmatprep.subr.bf16.mxu0 0
    %303 = vmatpush1.bf16.msra.mxu0 0
    %304 = vmatprep.subr.bf16.mxu0 0
    %305 = vmatpush1.bf16.msra.mxu0 0
    %306 = vmatprep.subr.bf16.mxu0 0
    %307 = vmatpush1.bf16.msra.mxu0 0
    %308 = vmatprep.subr.bf16.mxu0 0
    %309 = vmatpush1.bf16.msra.mxu0 0
    %310 = vmatprep.subr.bf16.mxu0 0
    %311 = vmatpush1.bf16.msra.mxu0 0
    %312 = vmatprep.subr.bf16.mxu0 0
    %313 = vmatpush1.bf16.msra.mxu0 0
    %314 = vmatprep.subr.bf16.mxu0 0
    %315 = vmatpush1.bf16.msra.mxu0 0
    %316 = vmatprep.mubr.bf16.mxu0 0
    %317 = vmatmul.mubr.bf16.gmra.mrb[0].mxu0 %v282
    %v318 = vpop.f32.mrb[0].mxu0
    %v319 = vadd.f32 %v262, %v318
    %v320 = vpop.f32.mrb[0].mxu0
    %v321 = vpop.f32.mrb[0].mxu0
    %v322 = vadd.f32 %v262, %v321
    %v323 = vpop.f32.mrb[0].mxu0
    %324 = vdwg.mxu0
    %v325 = vpack.c.bf16 %v175, %v175
    %v326 = vpack.c.bf16 %v178, %v178
    %v327 = vpack.c.bf16 %v247, %v247
    %v328 = vpack.c.bf16 %v250, %v250
    %329 = vmatprep.subr.bf16.mxu0 0
    %330 = vmatpush1.bf16.xpose.msra.mxu0 %v327
    %331 = vmatprep.subr.bf16.mxu0 0
    %332 = vmatpush1.bf16.xpose.msra.mxu0 0
    %333 = vmatprep.subr.bf16.mxu0 0
    %334 = vmatpush1.bf16.xpose.msra.mxu0 0
    %335 = vmatprep.subr.bf16.mxu0 0
    %336 = vmatpush1.bf16.xpose.msra.mxu0 0
    %337 = vmatprep.subr.bf16.mxu0 0
    %338 = vmatpush1.bf16.xpose.msra.mxu0 0
    %339 = vmatprep.subr.bf16.mxu0 0
    %340 = vmatpush1.bf16.xpose.msra.mxu0 0
    %341 = vmatprep.subr.bf16.mxu0 0
    %342 = vmatpush1.bf16.xpose.msra.mxu0 0
    %343 = vmatprep.subr.bf16.mxu0 0
    %344 = vmatpush1.bf16.xpose.msra.mxu0 0
    %345 = vmatprep.subr.bf16.mxu0 0
    %346 = vmatpush1.bf16.xpose.msra.mxu0 0
    %347 = vmatprep.subr.bf16.mxu0 0
    %348 = vmatpush1.bf16.xpose.msra.mxu0 0
    %349 = vmatprep.subr.bf16.mxu0 0
    %350 = vmatpush1.bf16.xpose.msra.mxu0 0
    %351 = vmatprep.subr.bf16.mxu0 0
    %352 = vmatpush1.bf16.xpose.msra.mxu0 0
    %353 = vmatprep.subr.bf16.mxu0 0
    %354 = vmatpush1.bf16.xpose.msra.mxu0 0
    %355 = vmatprep.subr.bf16.mxu0 0
    %356 = vmatpush1.bf16.xpose.msra.mxu0 0
    %357 = vmatprep.subr.bf16.mxu0 0
    %358 = vmatpush1.bf16.xpose.msra.mxu0 0
    %359 = vmatprep.subr.bf16.mxu0 0
    %360 = vmatpush1.bf16.xpose.msra.mxu0 0
    %361 = vmatprep.mubr.bf16.mxu0 0
    %362 = vmatmul.mubr.bf16.gmra.mrb[0].mxu0 %v325
    %v363 = vpop.f32.mrb[0].mxu0
    %v364 = vadd.f32 0.0, %v363
    %v365 = vpop.f32.mrb[0].mxu0
    %v366 = vpop.f32.mrb[0].mxu0
    %v367 = vpop.f32.mrb[0].mxu0
    %368 = vdwg.mxu0
    %369 = vmatprep.subr.bf16.mxu0 0
    %370 = vmatpush1.bf16.xpose.msra.mxu0 %v328
    %371 = vmatprep.subr.bf16.mxu0 0
    %372 = vmatpush1.bf16.xpose.msra.mxu0 0
    %373 = vmatprep.subr.bf16.mxu0 0
    %374 = vmatpush1.bf16.xpose.msra.mxu0 0
    %375 = vmatprep.subr.bf16.mxu0 0
    %376 = vmatpush1.bf16.xpose.msra.mxu0 0
    %377 = vmatprep.subr.bf16.mxu0 0
    %378 = vmatpush1.bf16.xpose.msra.mxu0 0
    %379 = vmatprep.subr.bf16.mxu0 0
    %380 = vmatpush1.bf16.xpose.msra.mxu0 0
    %381 = vmatprep.subr.bf16.mxu0 0
    %382 = vmatpush1.bf16.xpose.msra.mxu0 0
    %383 = vmatprep.subr.bf16.mxu0 0
    %384 = vmatpush1.bf16.xpose.msra.mxu0 0
    %385 = vmatprep.subr.bf16.mxu0 0
    %386 = vmatpush1.bf16.xpose.msra.mxu0 0
    %387 = vmatprep.subr.bf16.mxu0 0
    %388 = vmatpush1.bf16.xpose.msra.mxu0 0
    %389 = vmatprep.subr.bf16.mxu0 0
    %390 = vmatpush1.bf16.xpose.msra.mxu0 0
    %391 = vmatprep.subr.bf16.mxu0 0
    %392 = vmatpush1.bf16.xpose.msra.mxu0 0
    %393 = vmatprep.subr.bf16.mxu0 0
    %394 = vmatpush1.bf16.xpose.msra.mxu0 0
    %395 = vmatprep.subr.bf16.mxu0 0
    %396 = vmatpush1.bf16.xpose.msra.mxu0 0
    %397 = vmatprep.subr.bf16.mxu0 0
    %398 = vmatpush1.bf16.xpose.msra.mxu0 0
    %399 = vmatprep.subr.bf16.mxu0 0
    %400 = vmatpush1.bf16.xpose.msra.mxu0 0
    %401 = vmatprep.mubr.bf16.mxu0 0
    %402 = vmatmul.mubr.bf16.gmra.mrb[0].mxu0 %v326
    %v403 = vpop.f32.mrb[0].mxu0
    %v404 = vadd.f32 0.0, %v403
    %v405 = vpop.f32.mrb[0].mxu0
    %v406 = vpop.f32.mrb[0].mxu0
    %v407 = vpop.f32.mrb[0].mxu0
    %408 = vdwg.mxu0
    %vm409 = vcmask 64512
    %v410 = vsel %vm409, %v364, -inf
    %411 = vmax.xlane.f32.xlu0 %v410
    %v412 = vpop.xlane.xlu0 %411
    %v413 = vsel %vm409, %v404, -inf
    %414 = vmax.xlane.f32.xlu0 %v413
    %v415 = vpop.xlane.xlu0 %414
    %v416 = vsub.f32 %v364, %v412
    %v417 = vsub.f32 %v404, %v415
    %v418 = vmul.f32 %v416, 1.442695
    %v419 = vpow.pop %v418
    %v420 = vmul.f32 %v417, 1.442695
    %v421 = vpow.pop %v420
    %v422 = vsel %vm409, %v419, 0.0
    %423 = vadd.xlane.f32.xlu0 %v422
    %v424 = vpop.xlane.xlu0 %423
    %v425 = vsel %vm409, %v421, 0.0
    %426 = vadd.xlane.f32.xlu0 %v425
    %v427 = vpop.xlane.xlu0 %426
    %v428 = vrcp.pop %v424
    %v429 = vrcp.pop %v427
    %v430 = vmul.f32 %v419, %v428
    %v431 = vmul.f32 %v421, %v429
    %v432 = vpack.c.bf16 %v430, %v430
    %v433 = vpack.c.bf16 %v431, %v431
    %v434 = vpack.c.bf16 %v319, %v319
    %v435 = vpack.c.bf16 %v322, %v322
    %v437 = vsel %vm409, %v432, 0
    %vm439 = vcmask 1043456
    %v441 = vsel %vm439, %v434, 0
    %443 = vmatprep.subr.bf16.mxu0 0
    %444 = vmatpush1.bf16.msra.mxu0 %v441
    %445 = vmatprep.subr.bf16.mxu0 0
    %446 = vmatpush1.bf16.msra.mxu0 0
    %447 = vmatprep.subr.bf16.mxu0 0
    %448 = vmatpush1.bf16.msra.mxu0 0
    %449 = vmatprep.subr.bf16.mxu0 0
    %450 = vmatpush1.bf16.msra.mxu0 0
    %451 = vmatprep.subr.bf16.mxu0 0
    %452 = vmatpush1.bf16.msra.mxu0 0
    %453 = vmatprep.subr.bf16.mxu0 0
    %454 = vmatpush1.bf16.msra.mxu0 0
    %455 = vmatprep.subr.bf16.mxu0 0
    %456 = vmatpush1.bf16.msra.mxu0 0
    %457 = vmatprep.subr.bf16.mxu0 0
    %458 = vmatpush1.bf16.msra.mxu0 0
    %459 = vmatprep.subr.bf16.mxu0 0
    %460 = vmatpush1.bf16.msra.mxu0 0
    %461 = vmatprep.subr.bf16.mxu0 0
    %462 = vmatpush1.bf16.msra.mxu0 0
    %463 = vmatprep.subr.bf16.mxu0 0
    %464 = vmatpush1.bf16.msra.mxu0 0
    %465 = vmatprep.subr.bf16.mxu0 0
    %466 = vmatpush1.bf16.msra.mxu0 0
    %467 = vmatprep.subr.bf16.mxu0 0
    %468 = vmatpush1.bf16.msra.mxu0 0
    %469 = vmatprep.subr.bf16.mxu0 0
    %470 = vmatpush1.bf16.msra.mxu0 0
    %471 = vmatprep.subr.bf16.mxu0 0
    %472 = vmatpush1.bf16.msra.mxu0 0
    %473 = vmatprep.subr.bf16.mxu0 0
    %474 = vmatpush1.bf16.msra.mxu0 0
    %475 = vmatprep.mubr.bf16.mxu0 0
    %476 = vmatmul.mubr.bf16.gmra.mrb[0].mxu0 %v437
    %v477 = vpop.f32.mrb[0].mxu0
    %v478 = vadd.f32 0.0, %v477
    %v479 = vpop.f32.mrb[0].mxu0
    %v480 = vpop.f32.mrb[0].mxu0
    %v481 = vpop.f32.mrb[0].mxu0
    %482 = vdwg.mxu0
    %v484 = vsel %vm409, %v433, 0
    %v487 = vsel %vm439, %v435, 0
    %489 = vmatprep.subr.bf16.mxu0 0
    %490 = vmatpush1.bf16.msra.mxu0 %v487
    %491 = vmatprep.subr.bf16.mxu0 0
    %492 = vmatpush1.bf16.msra.mxu0 0
    %493 = vmatprep.subr.bf16.mxu0 0
    %494 = vmatpush1.bf16.msra.mxu0 0
    %495 = vmatprep.subr.bf16.mxu0 0
    %496 = vmatpush1.bf16.msra.mxu0 0
    %497 = vmatprep.subr.bf16.mxu0 0
    %498 = vmatpush1.bf16.msra.mxu0 0
    %499 = vmatprep.subr.bf16.mxu0 0
    %500 = vmatpush1.bf16.msra.mxu0 0
    %501 = vmatprep.subr.bf16.mxu0 0
    %502 = vmatpush1.bf16.msra.mxu0 0
    %503 = vmatprep.subr.bf16.mxu0 0
    %504 = vmatpush1.bf16.msra.mxu0 0
    %505 = vmatprep.subr.bf16.mxu0 0
    %506 = vmatpush1.bf16.msra.mxu0 0
    %507 = vmatprep.subr.bf16.mxu0 0
    %508 = vmatpush1.bf16.msra.mxu0 0
    %509 = vmatprep.subr.bf16.mxu0 0
    %510 = vmatpush1.bf16.msra.mxu0 0
    %511 = vmatprep.subr.bf16.mxu0 0
    %512 = vmatpush1.bf16.msra.mxu0 0
    %513 = vmatprep.subr.bf16.mxu0 0
    %514 = vmatpush1.bf16.msra.mxu0 0
    %515 = vmatprep.subr.bf16.mxu0 0
    %516 = vmatpush1.bf16.msra.mxu0 0
    %517 = vmatprep.subr.bf16.mxu0 0
    %518 = vmatpush1.bf16.msra.mxu0 0
    %519 = vmatprep.subr.bf16.mxu0 0
    %520 = vmatpush1.bf16.msra.mxu0 0
    %521 = vmatprep.mubr.bf16.mxu0 0
    %522 = vmatmul.mubr.bf16.gmra.mrb[0].mxu0 %v484
    %v523 = vpop.f32.mrb[0].mxu0
    %v524 = vadd.f32 0.0, %v523
    %v525 = vpop.f32.mrb[0].mxu0
    %v526 = vpop.f32.mrb[0].mxu0
    %v527 = vpop.f32.mrb[0].mxu0
    %528 = vdwg.mxu0
    %vm529 = vcmask 130048
    %530 = vst.msk [vmem:[#allocation11] sm:$0xff] %vm529, %v478
    %531 = vst.msk [vmem:[#allocation11 + $0x8] sm:$0xff] %vm529, %v524
    // Predicated region
    $region58: #{tpu_custom_call.1} parent=1 // pred_check
      _
    $region59: #{tpu_custom_call.1} parent=1 // pred_check_branch
      %533 = sbr.rel (0) target = $region61
    $region60: #{tpu_custom_call.1} parent=1 // pred_region
      %s535 = ssub.s32 256, 256
      %536 = vsyncadd [#allocation4], %s535
      %s537 = sshll.u32 [#allocation11], 4
      %s538 = int_to_ptr.vmem [resolvable:$true] %s537
      %543 = dma.vmem_to_hbm [thread:$0]  %s538, 256, %s9, [#allocation4], 128, 128, 8
    $region61: #{tpu_custom_call.1} parent=1 // pred_fallthru
      _
    // Predicated region
    $region62: #{tpu_custom_call.1} parent=1 // pred_check
      _
    $region63: #{tpu_custom_call.1} parent=1 // pred_check_branch
      %545 = sbr.rel (0) target = $region65
    $region64: #{tpu_custom_call.1} parent=1 // pred_region
      %546 = dma.done [#allocation4], 256
    $region65: #{tpu_custom_call.1} parent=1 // pred_fallthru
      _
    %547 = vsyncpa [#allocation3], 1
    %548 = vsyncpa [#allocation6], 1
    %549 = vsyncpa [#allocation9], 1
    %550 = vsyncpa [#allocation4], 1

</llo_original>
